<compile_context>
chip_gen: v7x
topology: tpu7x:2x2x1
jax: 0.10.0
libtpu: 0.0.40
codegen_flags: <defaults>
</compile_context>

<pallas_src>
import jax
import jax.numpy as jnp
from jax.experimental import pallas as pl
from jax.experimental.pallas import tpu as pltpu

_LANE = 128


def _pra_kernel(x_ref, w_ref, b_ref, o_ref):
    # x_ref: (TB, PK) packed activations (VMEM)
    # w_ref: (PK, P)  block-diagonal weight (VMEM, tiny, grid-invariant)
    # b_ref: (1,)     scalar bias (SMEM)
    # o_ref: (TB, P)  packed outputs
    y = jnp.dot(x_ref[...], w_ref[...], preferred_element_type=jnp.float32)
    o_ref[...] = (y + b_ref[0]).astype(o_ref.dtype)


def pra_forward(x, weight, bias, *, block_rows=4096):
    """y = x @ weight.T + bias  (PyTorch nn.Linear(F, 1) semantics).

    x: (B, F) float32; weight: (1, F); bias: (1,). Returns (B, 1) float32.
    """
    B, F = x.shape
    x = x.astype(jnp.float32)
    w_row = weight.reshape(F).astype(jnp.float32)
    b = bias.reshape(1).astype(jnp.float32)

    # Lane packing factor: pack P batch rows per 128-lane row when F divides 128.
    if F <= _LANE and _LANE % F == 0:
        P = _LANE // F
    else:
        P = 1  # fallback: no packing, still tiled & pipelined over B

    Bp = ((B + P - 1) // P) * P
    if Bp != B:
        x = jnp.pad(x, ((0, Bp - B), (0, 0)))
    rows = Bp // P           # packed row count
    PK = P * F               # packed feature width (128 in the common case)

    x_packed = x.reshape(rows, PK)                          # contiguous, free
    # Block-diagonal weight: W_packed[j*F:(j+1)*F, j] = w_row
    w_packed = (jnp.eye(P, dtype=jnp.float32)[:, None, :]
                * w_row[None, :, None]).reshape(PK, P)

    # Row tile: ~2 MiB per buffer (4096 * 128 * 4B) -> comfortably double-buffers
    # inside the scoped VMEM budget on v5e (16 MiB) and v7x (32 MiB) while
    # amortizing the ~0.35us per-grid-step overhead.
    tb = min(block_rows, rows)
    if tb != rows:
        tb = max(8, (tb // 8) * 8)  # sublane-aligned tile when actually tiling
    grid = (pl.cdiv(rows, tb),)

    cost = pl.CostEstimate(
        flops=2 * B * F,
        transcendentals=0,
        bytes_accessed=B * F * 4 + B * 4 + F * 4,
    )

    out_packed = pl.pallas_call(
        _pra_kernel,
        out_shape=jax.ShapeDtypeStruct((rows, P), jnp.float32),
        grid_spec=pl.GridSpec(
            grid=grid,
            in_specs=[
                pl.BlockSpec((tb, PK), lambda i: (i, 0)),            # tiled x
                pl.BlockSpec((PK, P), lambda i: (0, 0)),             # whole weight
                pl.BlockSpec(memory_space=pltpu.MemorySpace.SMEM),   # scalar bias
            ],
            out_specs=pl.BlockSpec((tb, P), lambda i: (i, 0)),
        ),
        compiler_params=pltpu.CompilerParams(
            dimension_semantics=("parallel",),  # batch tiles are independent
        ),
        cost_estimate=cost,
    )(x_packed, w_packed, b)

    out = out_packed.reshape(Bp, 1)                          # contiguous, free
    return out[:B] if Bp != B else out


if __name__ == "__main__":
    # Small shapes consistent with the module: feature_size=32, batch=8.
    feature_size = 32
    batch = 8

    key = jax.random.PRNGKey(0)
    kx, kw, kb = jax.random.split(key, 3)

    # Deterministic parameter init (mimics nn.Linear uniform(-1/sqrt(F), 1/sqrt(F))).
    bound = 1.0 / jnp.sqrt(jnp.float32(feature_size))
    weight = jax.random.uniform(kw, (1, feature_size), jnp.float32, -bound, bound)
    bias = jax.random.uniform(kb, (1,), jnp.float32, -bound, bound)

    x = jax.random.normal(kx, (batch, feature_size), jnp.float32)

    out = pra_forward(x, weight, bias)
    jax.block_until_ready(out)

    # Cross-check against plain-JAX reference (same math as torch Linear).
    ref = x @ weight.T + bias
    assert out.shape == (batch, 1)
    assert jnp.allclose(out, ref, atol=1e-5), "mismatch vs reference"

    print("KERNEL_OK")
</pallas_src>

<mosaic_0001>
module attributes {stable_mosaic.version = 11 : i64} {
  func.func @_pra_kernel(%arg0: i32, %arg1: memref<2x128xf32, #tpu.memory_space<vmem>>, %arg2: memref<128x4xf32, #tpu.memory_space<vmem>>, %arg3: memref<1xf32, #tpu.memory_space<smem>>, %arg4: memref<2x4xf32, #tpu.memory_space<vmem>>) attributes {dimension_semantics = [#tpu.dimension_semantics<parallel>], iteration_bounds = array<i64: 1>, scalar_prefetch = 0 : i64, scratch_operands = 0 : i64, tpu.core_type = #tpu.core_type<tc>, window_params = [{transform_indices = @transform_0, window_bounds = array<i64: 2, 128>}, {pipeline_mode = #tpu.pipeline_mode<synchronous>, transform_indices = @transform_1, window_bounds = array<i64: 128, 4>}, {transform_indices = @transform_2, window_bounds = array<i64: 1>}, {transform_indices = @transform_3, window_bounds = array<i64: 2, 4>}]} {
    %c0 = arith.constant 0 : index
    %c0_0 = arith.constant 0 : index
    %0 = vector.load %arg1[%c0, %c0_0] : memref<2x128xf32, #tpu.memory_space<vmem>>, vector<2x128xf32>
    %c0_1 = arith.constant 0 : index
    %c0_2 = arith.constant 0 : index
    %1 = vector.load %arg2[%c0_1, %c0_2] : memref<128x4xf32, #tpu.memory_space<vmem>>, vector<128x4xf32>
    %cst = arith.constant dense<0.000000e+00> : vector<2x4xf32>
    %2 = tpu.matmul %0, %1, %cst {dimension_numbers = #tpu.dot_dimension_numbers<[1], [0], [0], [1], [0, 0, 1, 1], [], []>} : vector<2x128xf32>, vector<128x4xf32>, vector<2x4xf32> -> vector<2x4xf32>
    %c0_3 = arith.constant 0 : index
    %3 = memref.load %arg3[%c0_3] : memref<1xf32, #tpu.memory_space<smem>>
    %4 = vector.broadcast %3 : f32 to vector<2x4xf32>
    %5 = arith.addf %2, %4 : vector<2x4xf32>
    %c0_4 = arith.constant 0 : index
    %c0_5 = arith.constant 0 : index
    %6 = vector.load %arg4[%c0_4, %c0_5] : memref<2x4xf32, #tpu.memory_space<vmem>>, vector<2x4xf32>
    tpu.vector_store %arg4[%c0_4, %c0_5], %5 {strides = array<i32>} : memref<2x4xf32, #tpu.memory_space<vmem>>, vector<2x4xf32>,
    return
  }
  func.func @transform_0(%arg0: i32) -> (i32, i32) {
    %c0_i32 = arith.constant 0 : i32
    %c0_i32_0 = arith.constant 0 : i32
    return %arg0, %c0_i32 : i32, i32
  }
  func.func @transform_1(%arg0: i32) -> (i32, i32) {
    %c0_i32 = arith.constant 0 : i32
    %c0_i32_0 = arith.constant 0 : i32
    %c0_i32_1 = arith.constant 0 : i32
    return %c0_i32, %c0_i32_0 : i32, i32
  }
  func.func @transform_2(%arg0: i32) -> i32 {
    %c0_i32 = arith.constant 0 : i32
    %c0_i32_0 = arith.constant 0 : i32
    return %c0_i32 : i32
  }
  func.func @transform_3(%arg0: i32) -> (i32, i32) {
    %c0_i32 = arith.constant 0 : i32
    %c0_i32_0 = arith.constant 0 : i32
    return %arg0, %c0_i32 : i32, i32
  }
}

</mosaic_0001>

<llo_original>
// kernel: tpu_custom_call.1
$region0: #{tpu_custom_call.1}
  #allocation0 [shape = 'u32[]', space=smem, size = 0x4, offset = 0x4, fixed_abs, tag = 'smem constant byte address 0x4 - core index']
  #allocation1 [shape = 'u32[144,128]{1,0:T(1,128)}', space=vmem, size = 0x12000, scoped, tag = 'internal scratch']
  #allocation2 [shape = 'f32[1]{0:T(128)S(6)}', space=smem, size = 0x200, scoped, tag = 'scoped memory for tpu_custom_call.1']
  %s0 = inlined_call_operand.vmem [shape: f32[2,128], index: 0, kind: input, shape index: {}]
  %s1 = inlined_call_operand.vmem [shape: f32[128,4], index: 1, kind: input, shape index: {}]
  %s2 = inlined_call_operand.<no memory space> [shape: f32[1], index: 2, kind: input, shape index: {}]
  %s3 = inlined_call_operand.hbm [shape: f32[2,4], index: 3, kind: output, shape index: {}]
  %s4 = sld [smem:[#allocation0]]
  $region22: #{tpu_custom_call.1} parent=0
    _
  %s6 = ssub.s32 1, %s4
  %s7 = scalar_select 0, %s6, %s4
  %8 = sst [smem:[#allocation2]] %s2
  $region1: #{tpu_custom_call.1} parent=0
    #allocation3 [shape = 'u8[1024]{0}', space=vmem, size = 0x400, scoped, tag = 'output window, operand 0, single buffered']
    #allocation4 [shape = 's32[1]{0}', space=sflag, size = 0x4, scoped, tag = 'scoped memory for tpu_custom_call.1']
    %9 = vsyncpa [#allocation4], 0
    // Predicated region
    $region2: #{tpu_custom_call.1} parent=1 // pred_check
      _
    $region3: #{tpu_custom_call.1} parent=1 // pred_check_branch
      %11 = sbr.rel (0) target = $region5
    $region4: #{tpu_custom_call.1} parent=1 // pred_region
      _
    $region5: #{tpu_custom_call.1} parent=1 // pred_fallthru
      _
    // Predicated region
    $region6: #{tpu_custom_call.1} parent=1 // pred_check
      _
    $region7: #{tpu_custom_call.1} parent=1 // pred_check_branch
      %13 = sbr.rel (0) target = $region9
    $region8: #{tpu_custom_call.1} parent=1 // pred_region
      _
    $region9: #{tpu_custom_call.1} parent=1 // pred_fallthru
      _
    // Predicated region
    $region10: #{tpu_custom_call.1} parent=1 // pred_check
      _
    $region11: #{tpu_custom_call.1} parent=1 // pred_check_branch
      %15 = sbr.rel (0) target = $region13
    $region12: #{tpu_custom_call.1} parent=1 // pred_region
      _
    $region13: #{tpu_custom_call.1} parent=1 // pred_fallthru
      _
    %v16 = vld [vmem:[%s0] sm:$0x3]
    %v17 = vld [vmem:[%s1] sm:$0xff]
    %v18 = vld [vmem:[%s1 + $0x8] sm:$0xff]
    %v19 = vld [vmem:[%s1 + $0x10] sm:$0xff]
    %v20 = vld [vmem:[%s1 + $0x18] sm:$0xff]
    %v21 = vld [vmem:[%s1 + $0x20] sm:$0xff]
    %v22 = vld [vmem:[%s1 + $0x28] sm:$0xff]
    %v23 = vld [vmem:[%s1 + $0x30] sm:$0xff]
    %v24 = vld [vmem:[%s1 + $0x38] sm:$0xff]
    %v25 = vld [vmem:[%s1 + $0x40] sm:$0xff]
    %v26 = vld [vmem:[%s1 + $0x48] sm:$0xff]
    %v27 = vld [vmem:[%s1 + $0x50] sm:$0xff]
    %v28 = vld [vmem:[%s1 + $0x58] sm:$0xff]
    %v29 = vld [vmem:[%s1 + $0x60] sm:$0xff]
    %v30 = vld [vmem:[%s1 + $0x68] sm:$0xff]
    %v31 = vld [vmem:[%s1 + $0x70] sm:$0xff]
    %v32 = vld [vmem:[%s1 + $0x78] sm:$0xff]
    %s33 = sld [smem:[#allocation2]]
    %v34 = vstv %s33
    %35 = vmatprep.subr.mxu0 0.0
    %36 = vmatpush1.msra.mxu0 %v17
    %37 = vmatprep.subr.mxu0 0.0
    %38 = vmatpush1.msra.mxu0 %v18
    %39 = vmatprep.subr.mxu0 0.0
    %40 = vmatpush1.msra.mxu0 %v19
    %41 = vmatprep.subr.mxu0 0.0
    %42 = vmatpush1.msra.mxu0 %v20
    %43 = vmatprep.subr.mxu0 0.0
    %44 = vmatpush1.msra.mxu0 %v21
    %45 = vmatprep.subr.mxu0 0.0
    %46 = vmatpush1.msra.mxu0 %v22
    %47 = vmatprep.subr.mxu0 0.0
    %48 = vmatpush1.msra.mxu0 %v23
    %49 = vmatprep.subr.mxu0 0.0
    %50 = vmatpush1.msra.mxu0 %v24
    %51 = vmatprep.subr.mxu0 0.0
    %52 = vmatpush1.msra.mxu0 %v25
    %53 = vmatprep.subr.mxu0 0.0
    %54 = vmatpush1.msra.mxu0 %v26
    %55 = vmatprep.subr.mxu0 0.0
    %56 = vmatpush1.msra.mxu0 %v27
    %57 = vmatprep.subr.mxu0 0.0
    %58 = vmatpush1.msra.mxu0 %v28
    %59 = vmatprep.subr.mxu0 0.0
    %60 = vmatpush1.msra.mxu0 %v29
    %61 = vmatprep.subr.mxu0 0.0
    %62 = vmatpush1.msra.mxu0 %v30
    %63 = vmatprep.subr.mxu0 0.0
    %64 = vmatpush1.msra.mxu0 %v31
    %65 = vmatprep.subr.mxu0 0.0
    %66 = vmatpush1.msra.mxu0 %v32
    %67 = vmatprep.subr.mxu0 0.0
    %68 = vmatpush1.msra.mxu0 0.0
    %69 = vmatprep.subr.mxu0 0.0
    %70 = vmatpush1.msra.mxu0 0.0
    %71 = vmatprep.subr.mxu0 0.0
    %72 = vmatpush1.msra.mxu0 0.0
    %73 = vmatprep.subr.mxu0 0.0
    %74 = vmatpush1.msra.mxu0 0.0
    %75 = vmatprep.subr.mxu0 0.0
    %76 = vmatpush1.msra.mxu0 0.0
    %77 = vmatprep.subr.mxu0 0.0
    %78 = vmatpush1.msra.mxu0 0.0
    %79 = vmatprep.subr.mxu0 0.0
    %80 = vmatpush1.msra.mxu0 0.0
    %81 = vmatprep.subr.mxu0 0.0
    %82 = vmatpush1.msra.mxu0 0.0
    %83 = vmatprep.subr.mxu0 0.0
    %84 = vmatpush1.msra.mxu0 0.0
    %85 = vmatprep.subr.mxu0 0.0
    %86 = vmatpush1.msra.mxu0 0.0
    %87 = vmatprep.subr.mxu0 0.0
    %88 = vmatpush1.msra.mxu0 0.0
    %89 = vmatprep.subr.mxu0 0.0
    %90 = vmatpush1.msra.mxu0 0.0
    %91 = vmatprep.subr.mxu0 0.0
    %92 = vmatpush1.msra.mxu0 0.0
    %93 = vmatprep.subr.mxu0 0.0
    %94 = vmatpush1.msra.mxu0 0.0
    %95 = vmatprep.subr.mxu0 0.0
    %96 = vmatpush1.msra.mxu0 0.0
    %97 = vmatprep.subr.mxu0 0.0
    %98 = vmatpush1.msra.mxu0 0.0
    %99 = vmatprep.mubr.f32.mxu0 0.0
    %100 = vmatmul.mubr.f32.gmra.mrb[0].mxu0 %v16
    %v101 = vpop.f32.mrb[0].mxu0
    %v102 = vadd.f32 %v34, %v101
    %v103 = vpop.f32.mrb[0].mxu0
    %104 = vdwg.mxu0
    %vm105 = vcmask 25600
    %106 = vst.msk [vmem:[#allocation3] sm:$0x3] %vm105, %v102
    // Predicated region
    $region14: #{tpu_custom_call.1} parent=1 // pred_check
      _
    $region15: #{tpu_custom_call.1} parent=1 // pred_check_branch
      %108 = sbr.rel (0) target = $region17
    $region16: #{tpu_custom_call.1} parent=1 // pred_region
      %s110 = ssub.s32 32, 32
      %111 = vsyncadd [#allocation4], %s110
      %s113 = sshll.u32 [#allocation3], 4
      %s114 = int_to_ptr.vmem [resolvable:$true] %s113
      %116 = dma.vmem_to_hbm [thread:$0]  %s114, 32, %s3, [#allocation4]
    $region17: #{tpu_custom_call.1} parent=1 // pred_fallthru
      _
    // Predicated region
    $region18: #{tpu_custom_call.1} parent=1 // pred_check
      _
    $region19: #{tpu_custom_call.1} parent=1 // pred_check_branch
      %118 = sbr.rel (0) target = $region21
    $region20: #{tpu_custom_call.1} parent=1 // pred_region
      %119 = dma.done [#allocation4], 32
    $region21: #{tpu_custom_call.1} parent=1 // pred_fallthru
      _
    %120 = vsyncpa [#allocation4], 1

</llo_original>
